<compile_context>
chip_gen: v6e
topology: v6e:2x2x1
jax: 0.10.0
libtpu: 0.0.40
codegen_flags: <defaults>
</compile_context>

<pallas_src>
import functools

import jax
import jax.numpy as jnp
from jax import lax
from jax.experimental import pallas as pl
from jax.experimental.pallas import tpu as pltpu


# -----------------------------------------------------------------------------
# Pure-python helpers (ported verbatim from the PyTorch file, minus torch).
# -----------------------------------------------------------------------------
def schedule_hpu(nlu_hpu, l_hs):
    decode_hpu = []
    st = 0
    for l_hs1 in l_hs:
        decode_hpu.append(nlu_hpu[st:st + l_hs1])
        st += l_hs1
    batch_location = [[] for _ in range(len(l_hs))]
    batch_data = []
    l_hs_matrix = [list(range(l_hs1)) for l_hs1 in l_hs]
    max_l_hs = max(l_hs)
    for i in range(len(l_hs_matrix)):
        if len(l_hs_matrix[i]) < max_l_hs:
            l_hs_matrix[i] += [-1 for _ in range(max_l_hs - len(l_hs_matrix[i]))]
    for i in range(max_l_hs):
        batch_data1 = []
        for j in range(len(l_hs)):
            if l_hs_matrix[j][i] != -1:
                batch_location[j].append((i, len(batch_data1)))
                batch_data1.append(decode_hpu[j][i])
        batch_data.append(batch_data1)
    return batch_data, batch_location


def positional_embedding(seq_len, demb):
    pos_seq = jnp.arange(seq_len, dtype=jnp.float32)
    inv_freq = 1.0 / (10000.0 ** (jnp.arange(0.0, demb, 2.0, dtype=jnp.float32) / demb))
    sinusoid = jnp.outer(pos_seq, inv_freq)
    return jnp.concatenate([jnp.sin(sinusoid), jnp.cos(sinusoid)], axis=-1)  # (T, demb)


# -----------------------------------------------------------------------------
# Bidirectional multi-layer LSTM `encode` (plain-JAX glue; variable lengths).
# -----------------------------------------------------------------------------
def encode_bilstm(lstm_params, x, lengths, hc0=None, last_only=True):
    """x: (n, T, D_in) float32, lengths: (n,) int32.  Returns (n, 1, 2H) if last_only."""
    n, T, _ = x.shape
    num_layers = len(lstm_params)
    H = lstm_params[0]['w_hh_f'].shape[-1]
    if hc0 is None:
        h0 = jnp.zeros((num_layers * 2, n, H), jnp.float32)
        c0 = jnp.zeros((num_layers * 2, n, H), jnp.float32)
    else:
        h0, c0 = hc0
    lengths = jnp.asarray(lengths, dtype=jnp.int32)

    inp = x
    for l, p in enumerate(lstm_params):
        dir_outs = []
        for d, suf in enumerate(('f', 'b')):
            w_ih, w_hh = p['w_ih_' + suf], p['w_hh_' + suf]
            b_ih, b_hh = p['b_ih_' + suf], p['b_hh_' + suf]
            reverse = (d == 1)

            def step(carry, t, layer_inp=inp, w_ih=w_ih, w_hh=w_hh, b_ih=b_ih, b_hh=b_hh):
                h, c = carry
                xt = layer_inp[:, t, :]
                gates = xt @ w_ih.T + b_ih + h @ w_hh.T + b_hh
                i, f, g, o = jnp.split(gates, 4, axis=-1)
                i = jax.nn.sigmoid(i)
                f = jax.nn.sigmoid(f)
                g = jnp.tanh(g)
                o = jax.nn.sigmoid(o)
                c_new = f * c + i * g
                h_new = o * jnp.tanh(c_new)
                valid = (t < lengths)[:, None]
                h = jnp.where(valid, h_new, h)
                c = jnp.where(valid, c_new, c)
                return (h, c), h

            ts = jnp.arange(T - 1, -1, -1) if reverse else jnp.arange(T)
            (_, _), hs = lax.scan(step, (h0[2 * l + d], c0[2 * l + d]), ts)
            hs = jnp.transpose(hs, (1, 0, 2))  # (n, T, H) in scan order
            if reverse:
                hs = hs[:, ::-1, :]
            dir_outs.append(hs)
        inp = jnp.concatenate(dir_outs, axis=-1)  # (n, T, 2H)

    if last_only:
        idx = lengths - 1
        return inp[jnp.arange(n), idx, :][:, None, :]  # (n, 1, 2H)
    return inp


# -----------------------------------------------------------------------------
# Pallas kernel: single-program fused (kl splice + pos add + course_fc matmul).
#
# Inputs are already projected wrapper-side through a fused emb_fc+sig_fc lookup
# table; the course one-hot matmul was replaced by a per-dialog gathered row
# (bias folded in).  The kernel therefore runs exactly ONE MXU matmul over the
# whole flattened (B*T, E) slab.
# -----------------------------------------------------------------------------
def _fused_emb_kernel(proj_ref, kl_ref, pos_ref, crs_ref, wct_ref, o_ref, *, seq_len):
    # proj_ref/kl_ref/pos_ref/crs_ref : (B*T, E) f32   (whole batch, flattened)
    # wct_ref                         : (E, E)  bf16   (course_fc weight, top rows)
    # o_ref                           : (B*T, E) f32
    n_rows = proj_ref.shape[0]
    row = lax.broadcasted_iota(jnp.int32, (n_rows, 1), 0)
    is_kl_row = (row % seq_len) == 0                       # row 0 of every dialog

    # splice kl into row 0 of each dialog (== torch.cat([kl[:,None,:], inputs], 1)),
    # then add the positional embedding.  All element-wise math stays f32 (v5e-safe).
    full = jnp.where(is_kl_row, kl_ref[...], proj_ref[...]) + pos_ref[...]

    # course_fc: single MXU matmul over all B*T rows, bf16 operands, f32 accumulation.
    out = jnp.dot(full.astype(jnp.bfloat16), wct_ref[...],
                  preferred_element_type=jnp.float32)

    # + (course one-hot @ W_course[E:] + b_course), pre-gathered per dialog row.
    o_ref[...] = out + crs_ref[...]


def fused_embedding_pallas(emb_table, inputs_arr, kl, crs_rows, pos, Wc_top):
    """emb_table: (V, E) fused emb_fc+sig_fc projection per word id.
       inputs_arr: (B, S) int32 word ids.  kl: (B, E).  crs_rows: (B, E).
       pos: (T, E) with T = S + 1.  Wc_top: (E, E) = W_course[:E]."""
    B, S = inputs_arr.shape
    T = S + 1
    E = pos.shape[-1]
    BT = B * T

    # Row 0 of every dialog gets a dummy id 0; its projection is replaced by kl in-kernel.
    ids_full = jnp.concatenate(
        [jnp.zeros((B, 1), jnp.int32), inputs_arr.astype(jnp.int32)], axis=1)   # (B, T)
    proj2d = emb_table[ids_full.reshape(BT)]                                    # (BT, E)

    # Tiny (2 KiB) layout-plumbing broadcasts so the kernel sees one flat slab.
    kl2d = jnp.broadcast_to(kl[:, None, :], (B, T, E)).reshape(BT, E)
    pos2d = jnp.tile(pos, (B, 1))                                               # (BT, E)
    crs2d = jnp.broadcast_to(crs_rows[:, None, :], (B, T, E)).reshape(BT, E)
    wct_bf16 = Wc_top.astype(jnp.bfloat16)

    out2d = pl.pallas_call(
        functools.partial(_fused_emb_kernel, seq_len=T),
        out_shape=jax.ShapeDtypeStruct((BT, E), jnp.float32),
        in_specs=[pl.BlockSpec(memory_space=pltpu.MemorySpace.VMEM)] * 5,
        out_specs=pl.BlockSpec(memory_space=pltpu.MemorySpace.VMEM),
    )(proj2d, kl2d, pos2d, crs2d, wct_bf16)
    return out2d.reshape(B, T, E)


def fused_embedding_reference(word_emb, inputs_arr, kl, course_ids, pos, params, cfg):
    """Pure-JAX f32 reference of the fused op (original math, no table precompute)."""
    E = cfg['tf_emb_size']
    word_size, sig_class = cfg['word_size'], cfg['sig_class']
    x_emb = word_emb[inputs_arr]                                               # (B, S, De)
    sig_1h = jax.nn.one_hot(jnp.maximum(inputs_arr - (word_size - 1), 0),
                            sig_class, dtype=jnp.float32)                      # (B, S, 5)
    h = (x_emb @ params['W_emb_fc'] + params['b_emb_fc']
         + sig_1h @ params['W_sig_fc'] + params['b_sig_fc'])                   # (B, S, E)
    full = jnp.concatenate([kl[:, None, :], h], axis=1) + pos[None]            # (B, T, E)
    course_1h = jax.nn.one_hot(course_ids, cfg['course_nb'], dtype=jnp.float32)[:, None, :]
    return (full @ params['W_course'][:E]
            + course_1h @ params['W_course'][E:]
            + params['b_course'])


# -----------------------------------------------------------------------------
# Parameters & forward pass (mirrors Embedding_layer.forward).
# -----------------------------------------------------------------------------
CFG = dict(word_size=48, emb_size=32, tf_emb_size=32, lS=2, dr=0.0,
           max_len=8, sig_class=5, course_nb=42)


def init_params(key, cfg):
    De, E, lS = cfg['emb_size'], cfg['tf_emb_size'], cfg['lS']
    H = E // lS
    keys = iter(jax.random.split(key, 40))

    def nrm(shape, scale=0.1):
        return scale * jax.random.normal(next(keys), shape, jnp.float32)

    params = dict(
        word_emb=nrm((cfg['word_size'], De), 1.0),
        W_emb_fc=nrm((De, E)), b_emb_fc=nrm((E,)),
        W_sig_fc=nrm((cfg['sig_class'], E)), b_sig_fc=nrm((E,)),
        W_course=nrm((E + cfg['course_nb'], E)), b_course=nrm((E,)),
        W_hidden=nrm((E, E * lS)), b_hidden=nrm((E * lS,)),
        W_cell=nrm((E, E * lS)), b_cell=nrm((E * lS,)),
    )
    lstm = []
    for l in range(lS):
        d_in = De if l == 0 else 2 * H
        layer = {}
        for suf in ('f', 'b'):
            layer['w_ih_' + suf] = nrm((4 * H, d_in))
            layer['w_hh_' + suf] = nrm((4 * H, H))
            layer['b_ih_' + suf] = nrm((4 * H,))
            layer['b_hh_' + suf] = nrm((4 * H,))
        lstm.append(layer)
    params['lstm'] = lstm
    return params


def embedding_layer_forward(params, cfg, w2id, course2id,
                            inputs_words, target_words, nlu_hpu_words, l_hs,
                            course_names, use_pallas=True):
    word_emb = params['word_emb']
    E, lS = cfg['tf_emb_size'], cfg['lS']
    word_size, sig_class = cfg['word_size'], cfg['sig_class']

    # sentence2id
    nlu_hpu = [[w2id[w] for w in s] for s in nlu_hpu_words]
    inputs_ids = [[w2id[w] for w in s] for s in inputs_words]
    target_ids = [[w2id[w] for w in s] for s in target_words]

    # ---- dialog-history LSTM path (plain JAX glue) ----
    batch_data, batch_location = schedule_hpu(nlu_hpu, l_hs)
    batch_hs, batch_arrs = [], []
    for b in range(len(batch_data)):
        hs1 = [len(s) for s in batch_data[b]]
        batch_hs.append(hs1)
        max_cur = max(hs1)
        embs = []
        for sent in batch_data[b]:
            e = word_emb[jnp.asarray(sent, dtype=jnp.int32)]
            if e.shape[0] < max_cur:
                e = jnp.concatenate(
                    [e, jnp.zeros((max_cur - e.shape[0], e.shape[1]), e.dtype)], 0)
            embs.append(e)
        batch_arrs.append(jnp.stack(embs, 0))

    kl = encode_bilstm(params['lstm'], batch_arrs[0],
                       jnp.asarray(batch_hs[0]), hc0=None, last_only=True)[:, 0, :]
    kl_rows = [kl[j] for j in range(kl.shape[0])]
    for b in range(1, len(batch_arrs)):
        sel = [j for j, bl in enumerate(batch_location) if b < len(bl)]
        tmp_h = jnp.stack([kl_rows[j] for j in sel], 0)
        hidden = tmp_h @ params['W_hidden'] + params['b_hidden']
        hidden = hidden.reshape(hidden.shape[0], lS * 2, E // 2).transpose(1, 0, 2)
        cell = tmp_h @ params['W_cell'] + params['b_cell']
        cell = cell.reshape(cell.shape[0], lS * 2, E // 2).transpose(1, 0, 2)
        tmp_kl = encode_bilstm(params['lstm'], batch_arrs[b], jnp.asarray(batch_hs[b]),
                               hc0=(hidden, cell), last_only=True)[:, 0, :]
        for j in sel:
            kl_rows[j] = tmp_kl[batch_location[j][b][1]]
    kl = jnp.stack(kl_rows, 0)  # (B, E)

    # ---- fused embedding hot path ----
    inputs_arr = jnp.asarray(inputs_ids, dtype=jnp.int32)      # (B, S)
    target_label = jnp.asarray(target_ids, dtype=jnp.int32)
    B, S = inputs_arr.shape
    T = S + 1
    assert T == cfg['max_len'], "cat([inputs, c_emb]) requires S + 1 == max_len"

    course_ids = jnp.asarray([course2id[c] for c in course_names], jnp.int32)
    pos = positional_embedding(T, E)                            # (T, E)

    if use_pallas:
        # Fold emb_fc + sig_fc into one lookup table: sig class is a deterministic
        # function of the word id (relu(id - (V-1))), so both projections + biases
        # collapse to table[i] = word_emb[i]@W_e + onehot(sig(i))@W_s + b_e + b_s.
        vocab = jnp.arange(word_size, dtype=jnp.int32)
        sig_tab = jax.nn.one_hot(jnp.maximum(vocab - (word_size - 1), 0),
                                 sig_class, dtype=jnp.float32)                  # (V, 5)
        emb_table = (word_emb @ params['W_emb_fc'] + params['b_emb_fc']
                     + sig_tab @ params['W_sig_fc'] + params['b_sig_fc'])       # (V, E)
        # course one-hot matmul -> row gather, with course_fc bias folded in.
        crs_rows = params['W_course'][E:][course_ids] + params['b_course']      # (B, E)
        out = fused_embedding_pallas(emb_table, inputs_arr, kl, crs_rows, pos,
                                     params['W_course'][:E])
    else:
        out = fused_embedding_reference(word_emb, inputs_arr, kl, course_ids, pos,
                                        params, cfg)
    return out, target_label


# -----------------------------------------------------------------------------
if __name__ == "__main__":
    cfg = CFG
    key = jax.random.PRNGKey(0)
    params = init_params(key, cfg)

    w2id = {f"w{i}": i for i in range(cfg['word_size'])}
    course2id = {f"c{i}": i for i in range(cfg['course_nb'])}

    # B=2 dialogs; dialog 0 has 2 history utterances, dialog 1 has 1.
    l_hs = [2, 1]
    nlu_hpu_words = [
        [f"w{(3 * k + 1) % cfg['word_size']}" for k in range(4)],   # dialog 0, utt 0
        [f"w{(5 * k + 2) % cfg['word_size']}" for k in range(3)],   # dialog 0, utt 1
        [f"w{(7 * k + 3) % cfg['word_size']}" for k in range(5)],   # dialog 1, utt 0
    ]
    S = cfg['max_len'] - 1
    inputs_words = [[f"w{(2 * k + 4 + 11 * b) % cfg['word_size']}" for k in range(S)]
                    for b in range(2)]
    target_words = [[f"w{(4 * k + 6 + 13 * b) % cfg['word_size']}" for k in range(6)]
                    for b in range(2)]
    course_names = ["c3", "c17"]

    out, target_label = embedding_layer_forward(
        params, cfg, w2id, course2id,
        [list(s) for s in inputs_words], [list(s) for s in target_words],
        [list(s) for s in nlu_hpu_words], l_hs, course_names,
        use_pallas=True)
    jax.block_until_ready(out)
    jax.block_until_ready(target_label)

    # validate the Pallas fused op against a pure-JAX f32 reference (original math)
    out_ref, _ = embedding_layer_forward(
        params, cfg, w2id, course2id,
        [list(s) for s in inputs_words], [list(s) for s in target_words],
        [list(s) for s in nlu_hpu_words], l_hs, course_names,
        use_pallas=False)
    jax.block_until_ready(out_ref)

    assert out.shape == (2, cfg['max_len'], cfg['tf_emb_size'])
    assert target_label.shape == (2, 6)
    max_err = float(jnp.max(jnp.abs(out - out_ref)))
    assert max_err < 1e-2, f"Pallas kernel mismatch vs reference: {max_err}"

    print("KERNEL_OK")
</pallas_src>

<mosaic_0001>
module attributes {stable_mosaic.version = 11 : i64} {
  func.func @_fused_emb_kernel(%arg0: memref<16x32xf32, #tpu.memory_space<vmem>>, %arg1: memref<16x32xf32, #tpu.memory_space<vmem>>, %arg2: memref<16x32xf32, #tpu.memory_space<vmem>>, %arg3: memref<16x32xf32, #tpu.memory_space<vmem>>, %arg4: memref<32x32xbf16, #tpu.memory_space<vmem>>, %arg5: memref<16x32xf32, #tpu.memory_space<vmem>>) attributes {dimension_semantics = [], scalar_prefetch = 0 : i64, scratch_operands = 0 : i64, tpu.core_type = #tpu.core_type<tc>} {
    %0 = tpu.iota {dimensions = array<i32: 0>} : vector<16x1xi32>
    %c8_i32 = arith.constant 8 : i32
    %c0_i32 = arith.constant 0 : i32
    %1 = arith.cmpi eq, %c8_i32, %c0_i32 : i32
    %c1_i32 = arith.constant 1 : i32
    %2 = arith.select %1, %c1_i32, %c8_i32 : i32
    %3 = vector.broadcast %2 : i32 to vector<16x1xi32>
    %4 = arith.remsi %0, %3 : vector<16x1xi32>
    %c0_i32_0 = arith.constant 0 : i32
    %5 = vector.broadcast %c0_i32_0 : i32 to vector<16x1xi32>
    %6 = arith.cmpi ne, %4, %5 : vector<16x1xi32>
    %c0_i32_1 = arith.constant 0 : i32
    %7 = vector.broadcast %c0_i32_1 : i32 to vector<16x1xi32>
    %8 = arith.cmpi slt, %4, %7 : vector<16x1xi32>
    %c0_i32_2 = arith.constant 0 : i32
    %9 = arith.cmpi slt, %2, %c0_i32_2 : i32
    %10 = vector.broadcast %9 : i1 to vector<16x1xi1>
    %11 = vector.broadcast %10 : vector<16x1xi1> to vector<16x1xi1>
    %12 = arith.xori %8, %11 : vector<16x1xi1>
    %13 = arith.andi %12, %6 : vector<16x1xi1>
    %14 = vector.broadcast %2 : i32 to vector<16x1xi32>
    %15 = arith.addi %4, %14 : vector<16x1xi32>
    %16 = arith.select %13, %15, %4 : vector<16x1xi1>, vector<16x1xi32>
    %c0_i32_3 = arith.constant 0 : i32
    %17 = vector.broadcast %c0_i32_3 : i32 to vector<16x1xi32>
    %18 = arith.cmpi eq, %16, %17 : vector<16x1xi32>
    %c0 = arith.constant 0 : index
    %c0_4 = arith.constant 0 : index
    %19 = vector.load %arg1[%c0, %c0_4] : memref<16x32xf32, #tpu.memory_space<vmem>>, vector<16x32xf32>
    %c0_5 = arith.constant 0 : index
    %c0_6 = arith.constant 0 : index
    %20 = vector.load %arg0[%c0_5, %c0_6] : memref<16x32xf32, #tpu.memory_space<vmem>>, vector<16x32xf32>
    %21 = vector.shape_cast %18 : vector<16x1xi1> to vector<16x1xi1>
    %22 = vector.broadcast %21 : vector<16x1xi1> to vector<16x32xi1>
    %23 = arith.select %22, %19, %20 : vector<16x32xi1>, vector<16x32xf32>
    %c0_7 = arith.constant 0 : index
    %c0_8 = arith.constant 0 : index
    %24 = vector.load %arg2[%c0_7, %c0_8] : memref<16x32xf32, #tpu.memory_space<vmem>>, vector<16x32xf32>
    %25 = arith.addf %23, %24 : vector<16x32xf32>
    %26 = arith.truncf %25 : vector<16x32xf32> to vector<16x32xbf16>
    %c0_9 = arith.constant 0 : index
    %c0_10 = arith.constant 0 : index
    %27 = vector.load %arg4[%c0_9, %c0_10] : memref<32x32xbf16, #tpu.memory_space<vmem>>, vector<32x32xbf16>
    %cst = arith.constant dense<0.000000e+00> : vector<16x32xf32>
    %28 = tpu.matmul %26, %27, %cst {dimension_numbers = #tpu.dot_dimension_numbers<[1], [0], [0], [1], [0, 0, 1, 1], [], []>} : vector<16x32xbf16>, vector<32x32xbf16>, vector<16x32xf32> -> vector<16x32xf32>
    %c0_11 = arith.constant 0 : index
    %c0_12 = arith.constant 0 : index
    %29 = vector.load %arg3[%c0_11, %c0_12] : memref<16x32xf32, #tpu.memory_space<vmem>>, vector<16x32xf32>
    %30 = arith.addf %28, %29 : vector<16x32xf32>
    %c0_13 = arith.constant 0 : index
    %c0_14 = arith.constant 0 : index
    %31 = vector.load %arg5[%c0_13, %c0_14] : memref<16x32xf32, #tpu.memory_space<vmem>>, vector<16x32xf32>
    tpu.vector_store %arg5[%c0_13, %c0_14], %30 {strides = array<i32>} : memref<16x32xf32, #tpu.memory_space<vmem>>, vector<16x32xf32>,
    return
  }
}

</mosaic_0001>

<llo_original>
// kernel: tpu_custom_call.1
$region0: #{tpu_custom_call.1}
  #allocation0 [shape = 'u32[]', space=smem, size = 0x4, offset = 0x4, fixed_abs, tag = 'smem constant byte address 0x4 - core index']
  #allocation1 [shape = 'u32[144,128]{1,0:T(1,128)}', space=vmem, size = 0x12000, scoped, tag = 'internal scratch']
  %s0 = inlined_call_operand.hbm [shape: f32[16,32], index: 0, kind: input, shape index: {}]
  %s1 = inlined_call_operand.hbm [shape: f32[16,32], index: 1, kind: input, shape index: {}]
  %s2 = inlined_call_operand.hbm [shape: f32[16,32], index: 2, kind: input, shape index: {}]
  %s3 = inlined_call_operand.hbm [shape: f32[16,32], index: 3, kind: input, shape index: {}]
  %s4 = inlined_call_operand.hbm [shape: bf16[32,32], index: 4, kind: input, shape index: {}]
  %s5 = inlined_call_operand.hbm [shape: f32[16,32], index: 5, kind: output, shape index: {}]
  %s6 = sld [smem:[#allocation0]]
  $region50: #{tpu_custom_call.1} parent=0
    _
  %s8 = ssub.s32 1, %s6
  %s9 = scalar_select 0, %s8, %s6
  $region1: #{tpu_custom_call.1} parent=0
    #allocation2 [shape = 'u8[8192]{0}', space=vmem, size = 0x2000, scoped, tag = 'input window, operand 0, single buffered']
    #allocation3 [shape = 's32[1]{0}', space=sflag, size = 0x4, scoped, tag = 'scoped memory for tpu_custom_call.1']
    #allocation4 [shape = 's32[1]{0}', space=sflag, size = 0x4, scoped, tag = 'scoped memory for tpu_custom_call.1']
    #allocation5 [shape = 'u8[8192]{0}', space=vmem, size = 0x2000, scoped, tag = 'input window, operand 1, single buffered']
    #allocation6 [shape = 's32[1]{0}', space=sflag, size = 0x4, scoped, tag = 'scoped memory for tpu_custom_call.1']
    #allocation7 [shape = 'u8[8192]{0}', space=vmem, size = 0x2000, scoped, tag = 'input window, operand 2, single buffered']
    #allocation8 [shape = 'u8[8192]{0}', space=vmem, size = 0x2000, scoped, tag = 'input window, operand 3, single buffered']
    #allocation9 [shape = 's32[1]{0}', space=sflag, size = 0x4, scoped, tag = 'scoped memory for tpu_custom_call.1']
    #allocation10 [shape = 'u8[8192]{0}', space=vmem, size = 0x2000, scoped, tag = 'input window, operand 4, single buffered']
    #allocation11 [shape = 'u8[8192]{0}', space=vmem, size = 0x2000, scoped, tag = 'output window, operand 0, single buffered']
    %10 = vsyncpa [#allocation3], 0
    %11 = vsyncpa [#allocation6], 0
    %12 = vsyncpa [#allocation9], 0
    %13 = vsyncpa [#allocation4], 0
    // Predicated region
    $region2: #{tpu_custom_call.1} parent=1 // pred_check
      _
    $region3: #{tpu_custom_call.1} parent=1 // pred_check_branch
      %15 = sbr.rel (0) target = $region5
    $region4: #{tpu_custom_call.1} parent=1 // pred_region
      %s17 = ssub.s32 256, 256
      %18 = vsyncadd [#allocation3], %s17
      %s19 = sshll.u32 [#allocation2], 4
      %s20 = int_to_ptr.vmem [resolvable:$true] %s19
      %25 = dma.hbm_to_vmem [thread:$0]  %s0, 256, %s20, [#allocation3], 128, 128, 8
    $region5: #{tpu_custom_call.1} parent=1 // pred_fallthru
      _
    // Predicated region
    $region6: #{tpu_custom_call.1} parent=1 // pred_check
      _
    $region7: #{tpu_custom_call.1} parent=1 // pred_check_branch
      %27 = sbr.rel (0) target = $region9
    $region8: #{tpu_custom_call.1} parent=1 // pred_region
      %s29 = ssub.s32 256, 256
      %30 = vsyncadd [#allocation6], %s29
      %s31 = sshll.u32 [#allocation5], 4
      %s32 = int_to_ptr.vmem [resolvable:$true] %s31
      %37 = dma.hbm_to_vmem [thread:$0]  %s1, 256, %s32, [#allocation6], 128, 128, 8
    $region9: #{tpu_custom_call.1} parent=1 // pred_fallthru
      _
    // Predicated region
    $region10: #{tpu_custom_call.1} parent=1 // pred_check
      _
    $region11: #{tpu_custom_call.1} parent=1 // pred_check_branch
      %39 = sbr.rel (0) target = $region13
    $region12: #{tpu_custom_call.1} parent=1 // pred_region
      %s41 = ssub.s32 256, 256
      %42 = vsyncadd [#allocation6], %s41
      %s43 = sshll.u32 [#allocation7], 4
      %s44 = int_to_ptr.vmem [resolvable:$true] %s43
      %49 = dma.hbm_to_vmem [thread:$0]  %s2, 256, %s44, [#allocation6], 128, 128, 8
    $region13: #{tpu_custom_call.1} parent=1 // pred_fallthru
      _
    // Predicated region
    $region14: #{tpu_custom_call.1} parent=1 // pred_check
      _
    $region15: #{tpu_custom_call.1} parent=1 // pred_check_branch
      %51 = sbr.rel (0) target = $region17
    $region16: #{tpu_custom_call.1} parent=1 // pred_region
      %s53 = ssub.s32 256, 256
      %54 = vsyncadd [#allocation9], %s53
      %s55 = sshll.u32 [#allocation8], 4
      %s56 = int_to_ptr.vmem [resolvable:$true] %s55
      %61 = dma.hbm_to_vmem [thread:$0]  %s3, 256, %s56, [#allocation9], 128, 128, 8
    $region17: #{tpu_custom_call.1} parent=1 // pred_fallthru
      _
    // Predicated region
    $region18: #{tpu_custom_call.1} parent=1 // pred_check
      _
    $region19: #{tpu_custom_call.1} parent=1 // pred_check_branch
      %63 = sbr.rel (0) target = $region21
    $region20: #{tpu_custom_call.1} parent=1 // pred_region
      %s65 = ssub.s32 256, 256
      %66 = vsyncadd [#allocation9], %s65
      %s67 = sshll.u32 [#allocation10], 4
      %s68 = int_to_ptr.vmem [resolvable:$true] %s67
      %73 = dma.hbm_to_vmem [thread:$0]  %s4, 256, %s68, [#allocation9], 64, 64, 4
    $region21: #{tpu_custom_call.1} parent=1 // pred_fallthru
      _
    // Predicated region
    $region22: #{tpu_custom_call.1} parent=1 // pred_check
      _
    $region23: #{tpu_custom_call.1} parent=1 // pred_check_branch
      %75 = sbr.rel (0) target = $region25
    $region24: #{tpu_custom_call.1} parent=1 // pred_region
      %76 = dma.done [#allocation3], 256
    $region25: #{tpu_custom_call.1} parent=1 // pred_fallthru
      _
    // Predicated region
    $region26: #{tpu_custom_call.1} parent=1 // pred_check
      _
    $region27: #{tpu_custom_call.1} parent=1 // pred_check_branch
      %78 = sbr.rel (0) target = $region29
    $region28: #{tpu_custom_call.1} parent=1 // pred_region
      %79 = dma.done [#allocation6], 256
    $region29: #{tpu_custom_call.1} parent=1 // pred_fallthru
      _
    // Predicated region
    $region30: #{tpu_custom_call.1} parent=1 // pred_check
      _
    $region31: #{tpu_custom_call.1} parent=1 // pred_check_branch
      %81 = sbr.rel (0) target = $region33
    $region32: #{tpu_custom_call.1} parent=1 // pred_region
      %82 = dma.done [#allocation6], 256
    $region33: #{tpu_custom_call.1} parent=1 // pred_fallthru
      _
    // Predicated region
    $region34: #{tpu_custom_call.1} parent=1 // pred_check
      _
    $region35: #{tpu_custom_call.1} parent=1 // pred_check_branch
      %84 = sbr.rel (0) target = $region37
    $region36: #{tpu_custom_call.1} parent=1 // pred_region
      %85 = dma.done [#allocation9], 256
    $region37: #{tpu_custom_call.1} parent=1 // pred_fallthru
      _
    // Predicated region
    $region38: #{tpu_custom_call.1} parent=1 // pred_check
      _
    $region39: #{tpu_custom_call.1} parent=1 // pred_check_branch
      %87 = sbr.rel (0) target = $region41
    $region40: #{tpu_custom_call.1} parent=1 // pred_region
      %88 = dma.done [#allocation9], 256
    $region41: #{tpu_custom_call.1} parent=1 // pred_fallthru
      _
    %v90 = vlaneseq
    %v91 = vshrl.u32 %v90, 7
    %v92 = vadd.s32 %v91, 8
    %vm93 = vcmp.lt.s32.totalorder %v91, 0
    %v94 = vsub.s32 0, %v91
    %v95 = vsel %vm93, %v94, %v91
    %v96 = vshrl.u32 %v95, 3
    %v97 = vand.u32 %v95, 7
    %v98 = vsub.s32 0, %v97
    %v99 = vsel %vm93, %v98, %v97
    %vm100 = vcmp.lt.s32.totalorder %v92, 0
    %v101 = vsub.s32 0, %v92
    %v102 = vsel %vm100, %v101, %v92
    %v103 = vshrl.u32 %v102, 3
    %v104 = vand.u32 %v102, 7
    %v105 = vsub.s32 0, %v104
    %v106 = vsel %vm100, %v105, %v104
    %vm107 = vcmp.ne.s32.totalorder %v99, 0
    %vm108 = vcmp.ne.s32.totalorder %v106, 0
    %vm109 = vcmp.lt.s32.totalorder %v99, 0
    %vm110 = vcmp.lt.s32.totalorder %v106, 0
    %vm111 = vmand %vm109, %vm107
    %vm112 = vmand %vm110, %vm108
    %v113 = vadd.s32 %v99, 8
    %v114 = vadd.s32 %v106, 8
    %v115 = vsel %vm111, %v113, %v99
    %v116 = vsel %vm112, %v114, %v106
    %vm117 = vcmp.eq.s32.totalorder %v115, 0
    %vm118 = vcmp.eq.s32.totalorder %v116, 0
    %v119 = vld [vmem:[#allocation5] sm:$0xff]
    %v120 = vld [vmem:[#allocation5 + $0x8] sm:$0xff]
    %v121 = vld [vmem:[#allocation2] sm:$0xff]
    %v122 = vld [vmem:[#allocation2 + $0x8] sm:$0xff]
    %v123 = vsel %vm117, 1, 0
    %v124 = vsel %vm118, 1, 0
    %vm125 = vcmp.eq.s32.totalorder %v123, 1
    %vm126 = vcmp.eq.s32.totalorder %v124, 1
    %v127 = vsel %vm125, %v119, %v121
    %v128 = vsel %vm126, %v120, %v122
    %v129 = vld [vmem:[#allocation7] sm:$0xff]
    %v130 = vld [vmem:[#allocation7 + $0x8] sm:$0xff]
    %v131 = vadd.f32 %v127, %v129
    %v132 = vadd.f32 %v128, %v130
    %v133 = vpack.c.bf16 %v132, %v131
    %v134 = vld [vmem:[#allocation10] sm:$0xf]
    %v135 = vld [vmem:[#allocation10 + $0x4] sm:$0xf]
    %v136 = vld [vmem:[#allocation10 + $0x8] sm:$0xf]
    %v137 = vld [vmem:[#allocation10 + $0xc] sm:$0xf]
    %v138 = vld [vmem:[#allocation8] sm:$0xff]
    %v139 = vld [vmem:[#allocation8 + $0x8] sm:$0xff]
    %v144 = vunpack.c.l.b16 %v134
    %v145 = vunpack.c.l.b16 %v135
    %v146 = vunpack.c.l.b16 %v136
    %v147 = vunpack.c.l.b16 %v137
    %v148 = vpack.c.b16 %v145, %v144
    %v149 = vpack.c.b16 %v147, %v146
    %vm152 = vcmask 261120
    %v154 = vsel %vm152, %v133, 0
    %156 = vmatprep.subr.bf16.mxu0 0
    %157 = vmatpush1.bf16.msra.mxu0 0
    %158 = vmatprep.subr.bf16.mxu0 0
    %159 = vmatpush1.bf16.msra.mxu0 0
    %160 = vmatprep.subr.bf16.mxu0 0
    %161 = vmatpush1.bf16.msra.mxu0 0
    %162 = vmatprep.subr.bf16.mxu0 0
    %163 = vmatpush1.bf16.msra.mxu0 0
    %164 = vmatprep.subr.bf16.mxu0 0
    %165 = vmatpush1.bf16.msra.mxu0 0
    %166 = vmatprep.subr.bf16.mxu0 0
    %167 = vmatpush1.bf16.msra.mxu0 0
    %168 = vmatprep.subr.bf16.mxu0 0
    %169 = vmatpush1.bf16.msra.mxu0 %v149
    %170 = vmatprep.subr.bf16.mxu0 0
    %171 = vmatpush1.bf16.msra.mxu0 %v148
    %172 = vmatprep.subr.bf16.mxu0 0
    %173 = vmatpush2.bf16.msra.mxu0 0
    %174 = vmatprep.subr.bf16.mxu0 0
    %175 = vmatpush2.bf16.msra.mxu0 0
    %176 = vmatprep.subr.bf16.mxu0 0
    %177 = vmatpush2.bf16.msra.mxu0 0
    %178 = vmatprep.subr.bf16.mxu0 0
    %179 = vmatpush2.bf16.msra.mxu0 0
    %180 = vmatprep.subr.bf16.mxu0 0
    %181 = vmatpush2.bf16.msra.mxu0 0
    %182 = vmatprep.subr.bf16.mxu0 0
    %183 = vmatpush2.bf16.msra.mxu0 0
    %184 = vmatprep.subr.bf16.mxu0 0
    %185 = vmatpush2.bf16.msra.mxu0 0
    %186 = vmatprep.subr.bf16.mxu0 0
    %187 = vmatpush2.bf16.msra.mxu0 0
    %188 = vmatprep.mubr.bf16.mxu0 0
    %189 = vmatmul.mubr.bf16.gmra.mxu0 %v154
    %v190 = vpop.f32.mrf.mxu0
    %v191 = vadd.f32 %v138, %v190
    %v192 = vpop.f32.mrf.mxu0
    %v193 = vpop.f32.mrf.mxu0
    %v194 = vadd.f32 %v139, %v193
    %v195 = vpop.f32.mrf.mxu0
    %196 = vdwg.mxu0
    %197 = vst.msk [vmem:[#allocation11] sm:$0xff] %vm152, %v191
    %198 = vst.msk [vmem:[#allocation11 + $0x8] sm:$0xff] %vm152, %v194
    // Predicated region
    $region42: #{tpu_custom_call.1} parent=1 // pred_check
      _
    $region43: #{tpu_custom_call.1} parent=1 // pred_check_branch
      %200 = sbr.rel (0) target = $region45
    $region44: #{tpu_custom_call.1} parent=1 // pred_region
      %s202 = ssub.s32 256, 256
      %203 = vsyncadd [#allocation4], %s202
      %s204 = sshll.u32 [#allocation11], 4
      %s205 = int_to_ptr.vmem [resolvable:$true] %s204
      %210 = dma.vmem_to_hbm [thread:$0]  %s205, 256, %s5, [#allocation4], 128, 128, 8
    $region45: #{tpu_custom_call.1} parent=1 // pred_fallthru
      _
    // Predicated region
    $region46: #{tpu_custom_call.1} parent=1 // pred_check
      _
    $region47: #{tpu_custom_call.1} parent=1 // pred_check_branch
      %212 = sbr.rel (0) target = $region49
    $region48: #{tpu_custom_call.1} parent=1 // pred_region
      %213 = dma.done [#allocation4], 256
    $region49: #{tpu_custom_call.1} parent=1 // pred_fallthru
      _
    %214 = vsyncpa [#allocation3], 1
    %215 = vsyncpa [#allocation6], 1
    %216 = vsyncpa [#allocation9], 1
    %217 = vsyncpa [#allocation4], 1

</llo_original>
